<compile_context>
chip_gen: v7x
topology: tpu7x:2x2x1
jax: 0.10.0
libtpu: 0.0.40
codegen_flags: <defaults>
</compile_context>

<pallas_src>
import functools

import jax
import jax.numpy as jnp
from jax.experimental import pallas as pl
from jax.experimental.pallas import tpu as pltpu

_LANES = 128


def _clamp_kernel(x_ref, o_ref, *, min_val, max_val):
    x = x_ref[...]
    lo = jnp.asarray(min_val, dtype=x.dtype)
    hi = jnp.asarray(max_val, dtype=x.dtype)
    o_ref[...] = jnp.minimum(jnp.maximum(x, lo), hi)


@functools.lru_cache(maxsize=1)
def _generation_config():
    """Returns (target_block_bytes, vmem_limit_bytes or None) for this TPU gen."""
    try:
        kind = jax.devices()[0].device_kind.lower()
    except Exception:  # pragma: no cover - defensive
        kind = ""
    if "v7" in kind or "7x" in kind:
        # ~3.2 TB/s HBM: 8 MiB blocks cut the per-step tax to <10%.
        # 4 live buffers = 32 MiB; raise scoped VMEM to 40 MiB for headroom
        # (64 MiB physical per TC).
        return 8 * 1024 * 1024, 40 << 20
    if "v6" in kind:
        # ~1.4 TB/s: 6 MiB blocks (24 MiB live), explicit 40 MiB scoped VMEM.
        return 6 * 1024 * 1024, 40 << 20
    if "v5" in kind:
        # ~0.8 TB/s: 3 MiB blocks already put per-step overhead under ~5%;
        # 12 MiB live stays inside the 16 MiB default scoped-VMEM limit.
        return 3 * 1024 * 1024, None
    # Unknown generation: conservative default that fits every scoped limit.
    return 2 * 1024 * 1024, None


def _round_up(v: int, m: int) -> int:
    return ((v + m - 1) // m) * m


def clamp(x: jax.Array, min_val, max_val, *,
          target_block_bytes: int | None = None,
          donate: bool = False) -> jax.Array:
    """Elementwise clamp implemented as a Pallas TPU kernel."""
    orig_shape = x.shape
    dtype = x.dtype
    n = x.size
    if n == 0:
        return x

    if jnp.issubdtype(dtype, jnp.integer):
        # torch.clamp on float tensors casts the bounds; for integer tensors
        # fractional bounds would silently truncate here, so reject them.
        if float(min_val) != int(min_val) or float(max_val) != int(max_val):
            raise ValueError("Fractional clamp bounds are not supported for "
                             "integer dtypes.")

    itemsize = jnp.dtype(dtype).itemsize
    # Sublane pack for the dtype: 8 rows (f32), 16 (bf16/f16), 32 (int8/fp8).
    pack = max(8, 32 // itemsize)

    kernel = functools.partial(_clamp_kernel, min_val=min_val, max_val=max_val)
    cost = pl.CostEstimate(flops=n, transcendentals=0,
                           bytes_accessed=2 * n * itemsize)
    io_alias = {0: 0} if donate else {}

    gen_block_bytes, vmem_limit = _generation_config()
    block_bytes = target_block_bytes if target_block_bytes is not None else gen_block_bytes

    # Prefer a copy-free, lane-dense reshape: widest lane width dividing n.
    width = next((w for w in (1024, 512, 256, 128) if n % w == 0), None)

    if width is None:
        # Misaligned total size (n % 128 != 0).
        if n * itemsize <= block_bytes:
            # Small: one full-array block (block dims == array dims, exempt
            # from the (8,128) divisibility rule).  Copy-free flatten.
            out = pl.pallas_call(
                kernel,
                out_shape=jax.ShapeDtypeStruct((1, n), dtype),
                input_output_aliases=io_alias,
                cost_estimate=cost,
            )(x.reshape(1, n))
            return out.reshape(orig_shape)
        # Large misaligned: a single fused XLA pass (one HBM read + one write)
        # beats any pad/kernel/slice round-trip for a bandwidth-bound op.
        lo = jnp.asarray(min_val, dtype=dtype)
        hi = jnp.asarray(max_val, dtype=dtype)
        return jnp.minimum(jnp.maximum(x, lo), hi)

    rows = n // width
    x2d = x.reshape(rows, width)  # same linear order, no copy

    if rows * width * itemsize <= block_bytes:
        # Small-input fast path: one full-array block, no grid.
        out2d = pl.pallas_call(
            kernel,
            out_shape=jax.ShapeDtypeStruct((rows, width), dtype),
            input_output_aliases=io_alias,
            cost_estimate=cost,
        )(x2d)
        return out2d.reshape(orig_shape)

    # --- Tiled grid path -----------------------------------------------------
    # ~block_bytes per block; row tile rounded down to the sublane pack.
    rows_per_block = max(1, block_bytes // (width * itemsize))
    tr = max(pack, (rows_per_block // pack) * pack)
    # Guarantee a minimum grid depth (~4 steps) so the pipeline actually
    # overlaps DMA and compute, and both v7x TensorCores receive work.
    tr = min(tr, _round_up(pl.cdiv(rows, 4), pack))
    tr = max(pack, tr)
    grid = (pl.cdiv(rows, tr),)  # partial last block is masked automatically

    cp_kwargs = dict(dimension_semantics=("parallel",))
    if vmem_limit is not None:
        cp_kwargs["vmem_limit_bytes"] = vmem_limit

    out2d = pl.pallas_call(
        kernel,
        out_shape=jax.ShapeDtypeStruct((rows, width), dtype),
        grid_spec=pltpu.PrefetchScalarGridSpec(
            num_scalar_prefetch=0,
            grid=grid,
            in_specs=[pl.BlockSpec((tr, width), lambda i: (i, 0))],
            out_specs=pl.BlockSpec((tr, width), lambda i: (i, 0)),
        ),
        compiler_params=pltpu.CompilerParams(**cp_kwargs),
        input_output_aliases=io_alias,
        cost_estimate=cost,
    )(x2d)
    return out2d.reshape(orig_shape)


if __name__ == "__main__":
    # Module "parameters" (constructor args) — deterministic, in-script.
    clamp_min = -0.5
    clamp_max = 0.5

    key = jax.random.PRNGKey(0)

    # 1) Small NCHW tensor (single-block fast path, lane-dense reshape).
    x = jax.random.normal(key, (2, 4, 16, 16), dtype=jnp.float32)
    y = jax.block_until_ready(clamp(x, clamp_min, clamp_max))
    assert y.shape == x.shape and y.dtype == x.dtype
    assert bool(jnp.allclose(y, jnp.clip(x, clamp_min, clamp_max)))

    # 2) Tiled grid path: small tensor but with an explicit small block budget
    #    to force a multi-step (>= 4) pipelined grid on every generation.
    x_big = jax.random.normal(key, (2, 4, 128, 128), dtype=jnp.float32)  # 512 KiB
    y_big = jax.block_until_ready(
        clamp(x_big, clamp_min, clamp_max, target_block_bytes=128 * 1024))
    assert bool(jnp.allclose(y_big, jnp.clip(x_big, clamp_min, clamp_max)))

    # 3) Misaligned size, small: single full-array block (copy-free).
    x_odd = jax.random.normal(key, (3, 5, 7), dtype=jnp.float32)
    y_odd = jax.block_until_ready(clamp(x_odd, clamp_min, clamp_max))
    assert y_odd.shape == x_odd.shape
    assert bool(jnp.allclose(y_odd, jnp.clip(x_odd, clamp_min, clamp_max)))

    # 4) Misaligned size, "large" relative to the (overridden) block budget:
    #    single fused XLA pass fallback.
    x_odd_big = jax.random.normal(key, (3, 5, 1000), dtype=jnp.float32)
    y_odd_big = jax.block_until_ready(
        clamp(x_odd_big, clamp_min, clamp_max, target_block_bytes=32 * 1024))
    assert bool(jnp.allclose(y_odd_big, jnp.clip(x_odd_big, clamp_min, clamp_max)))

    print("KERNEL_OK")
</pallas_src>

<mosaic_0001>
module attributes {stable_mosaic.version = 11 : i64} {
  func.func @_clamp_kernel(%arg0: memref<2x1024xf32, #tpu.memory_space<vmem>>, %arg1: memref<2x1024xf32, #tpu.memory_space<vmem>>) attributes {dimension_semantics = [], scalar_prefetch = 0 : i64, scratch_operands = 0 : i64, tpu.core_type = #tpu.core_type<tc>} {
    %c0 = arith.constant 0 : index
    %c0_0 = arith.constant 0 : index
    %0 = vector.load %arg0[%c0, %c0_0] : memref<2x1024xf32, #tpu.memory_space<vmem>>, vector<2x1024xf32>
    %cst = arith.constant -5.000000e-01 : f32
    %1 = vector.broadcast %cst : f32 to vector<2x1024xf32>
    %2 = arith.maximumf %0, %1 : vector<2x1024xf32>
    %cst_1 = arith.constant 5.000000e-01 : f32
    %3 = vector.broadcast %cst_1 : f32 to vector<2x1024xf32>
    %4 = arith.minimumf %2, %3 : vector<2x1024xf32>
    %c0_2 = arith.constant 0 : index
    %c0_3 = arith.constant 0 : index
    %5 = vector.load %arg1[%c0_2, %c0_3] : memref<2x1024xf32, #tpu.memory_space<vmem>>, vector<2x1024xf32>
    tpu.vector_store %arg1[%c0_2, %c0_3], %4 {strides = array<i32>} : memref<2x1024xf32, #tpu.memory_space<vmem>>, vector<2x1024xf32>,
    return
  }
}

</mosaic_0001>

<llo_original>
// kernel: tpu_custom_call.1
$region0: #{tpu_custom_call.1}
  #allocation0 [shape = 'u32[]', space=smem, size = 0x4, offset = 0x4, fixed_abs, tag = 'smem constant byte address 0x4 - core index']
  #allocation1 [shape = 'u32[144,128]{1,0:T(1,128)}', space=vmem, size = 0x12000, scoped, tag = 'internal scratch']
  %s0 = inlined_call_operand.hbm [shape: f32[2,1024], index: 0, kind: input, shape index: {}]
  %s1 = inlined_call_operand.hbm [shape: f32[2,1024], index: 1, kind: output, shape index: {}]
  %s2 = sld [smem:[#allocation0]]
  $region18: #{tpu_custom_call.1} parent=0
    _
  %s4 = ssub.s32 1, %s2
  %s5 = scalar_select 0, %s4, %s2
  $region1: #{tpu_custom_call.1} parent=0
    #allocation2 [shape = 'u8[8192]{0}', space=vmem, size = 0x2000, scoped, tag = 'input window, operand 0, single buffered']
    #allocation3 [shape = 's32[1]{0}', space=sflag, size = 0x4, scoped, tag = 'scoped memory for tpu_custom_call.1']
    #allocation4 [shape = 's32[1]{0}', space=sflag, size = 0x4, scoped, tag = 'scoped memory for tpu_custom_call.1']
    #allocation5 [shape = 'u8[8192]{0}', space=vmem, size = 0x2000, scoped, tag = 'output window, operand 0, single buffered']
    %6 = vsyncpa [#allocation3], 0
    %7 = vsyncpa [#allocation4], 0
    // Predicated region
    $region2: #{tpu_custom_call.1} parent=1 // pred_check
      _
    $region3: #{tpu_custom_call.1} parent=1 // pred_check_branch
      %9 = sbr.rel (0) target = $region5
    $region4: #{tpu_custom_call.1} parent=1 // pred_region
      %s11 = ssub.s32 256, 256
      %12 = vsyncadd [#allocation3], %s11
      %s14 = sshll.u32 [#allocation2], 4
      %s15 = int_to_ptr.vmem [resolvable:$true] %s14
      %17 = dma.hbm_to_vmem [thread:$0]  %s0, 256, %s15, [#allocation3]
    $region5: #{tpu_custom_call.1} parent=1 // pred_fallthru
      _
    // Predicated region
    $region6: #{tpu_custom_call.1} parent=1 // pred_check
      _
    $region7: #{tpu_custom_call.1} parent=1 // pred_check_branch
      %19 = sbr.rel (0) target = $region9
    $region8: #{tpu_custom_call.1} parent=1 // pred_region
      %20 = dma.done [#allocation3], 256
    $region9: #{tpu_custom_call.1} parent=1 // pred_fallthru
      _
    %v21 = vld [vmem:[#allocation2] sm:$0xff]
    %v22 = vld [vmem:[#allocation2 + $0x8] sm:$0xff]
    %v23 = vmax.f32 %v21, -0.5
    %v24 = vmax.f32 %v22, -0.5
    %v25 = vmin.f32 %v23, 0.5
    %v26 = vmin.f32 %v24, 0.5
    %27 = vst [vmem:[#allocation5] sm:$0xff] %v25
    %28 = vst [vmem:[#allocation5 + $0x8] sm:$0xff] %v26
    // Predicated region
    $region10: #{tpu_custom_call.1} parent=1 // pred_check
      _
    $region11: #{tpu_custom_call.1} parent=1 // pred_check_branch
      %30 = sbr.rel (0) target = $region13
    $region12: #{tpu_custom_call.1} parent=1 // pred_region
      %s32 = ssub.s32 256, 256
      %33 = vsyncadd [#allocation4], %s32
      %s35 = sshll.u32 [#allocation5], 4
      %s36 = int_to_ptr.vmem [resolvable:$true] %s35
      %38 = dma.vmem_to_hbm [thread:$0]  %s36, 256, %s1, [#allocation4]
    $region13: #{tpu_custom_call.1} parent=1 // pred_fallthru
      _
    // Predicated region
    $region14: #{tpu_custom_call.1} parent=1 // pred_check
      _
    $region15: #{tpu_custom_call.1} parent=1 // pred_check_branch
      %40 = sbr.rel (0) target = $region17
    $region16: #{tpu_custom_call.1} parent=1 // pred_region
      %41 = dma.done [#allocation4], 256
    $region17: #{tpu_custom_call.1} parent=1 // pred_fallthru
      _
    %42 = vsyncpa [#allocation3], 1
    %43 = vsyncpa [#allocation4], 1

</llo_original>
